<compile_context>
chip_gen: v5e
topology: v5e:2x2
jax: 0.10.0
libtpu: 0.0.40
codegen_flags: <defaults>
</compile_context>

<pallas_src>
import jax
import jax.numpy as jnp
import numpy as np
from jax.experimental import pallas as pl
from jax.experimental.pallas import tpu as pltpu

# ----------------------------- small synthetic dims -------------------------
N = 64             # number of objects (rows)
NUM_CLASSES = 32   # len(classes)        (151 in the original)
CLASS_PAD = 128    # lane-dense padded decoder width
EMBED_DIM = 64     # embed_dim           (200 in the original, scaled down)
POS_DIM = 128      # pos_embed hidden    (128 in the original)
FUSION_DIM = 256   # fusion hidden       (4096 in the original, scaled down)
IN_PAD = 128       # fused input slab width: [logits | box(4) | zero pad]
BN_EPS = 1e-5

assert NUM_CLASSES + 4 <= IN_PAD


# --------------------------------- kernel -----------------------------------
def _linearized_context_kernel(
    inp_ref,                      # fused per-tile input [TN, IN_PAD] = [logits|box|0]
    wef_ref,                      # fused embed weight   [C, F]   (= E @ W2a)
    w1_ref, b1_ref,               # pos linear (BN + center_size folded) [4, P], [1, P]
    w2b_ref, b2_ref,              # fusion, pos half     [P, F], [1, F]
    w3_ref, b3_ref,               # decoder (lane-padded)[F, CP], [1, CP]
    dists_ref, rep_ref,           # outputs              [TN, CP], [TN, F]
):
    f32 = jnp.float32
    inp = inp_ref[...].astype(f32)                             # [TN, IN_PAD]

    # ---- softmax(obj_logits) (exact reciprocal; hides under the MXU dots) ---
    logits = inp[:, :NUM_CLASSES]                              # static lane slice
    m = jnp.max(logits, axis=-1, keepdims=True)
    e = jnp.exp(logits - m)
    p = e / jnp.sum(e, axis=-1, keepdims=True)

    # ---- fusion contribution of the embedding path (algebraically fused) ----
    #   (softmax @ E) @ W2a == softmax @ (E @ W2a) -> one matmul, no obj_embed.
    rep = jnp.dot(p.astype(wef_ref.dtype), wef_ref[...],
                  preferred_element_type=f32)                  # [TN, F]

    # ---- pos path: center_size + BN folded into w1/b1; K=4 -> VPU FMA -------
    # (avoids a degenerate K=4 MXU pass; VALU slots have slack here)
    pos = jnp.broadcast_to(b1_ref[...], (inp.shape[0], POS_DIM))
    for j in range(4):
        col = inp[:, NUM_CLASSES + j: NUM_CLASSES + j + 1]     # [TN, 1]
        pos = pos + col * w1_ref[j: j + 1, :]                  # FMA, broadcast
    pos = jnp.maximum(pos, 0.0)                                # [TN, P]

    # ---- fusion: add pos half, bias, ReLU -----------------------------------
    rep = rep + jnp.dot(pos.astype(w2b_ref.dtype), w2b_ref[...],
                        preferred_element_type=f32) + b2_ref[...]
    rep = jnp.maximum(rep, 0.0)                                # [TN, F]
    rep_ref[...] = rep.astype(rep_ref.dtype)

    # ---- decoder_lin (lane-padded output slab) ------------------------------
    dists = jnp.dot(rep.astype(w3_ref.dtype), w3_ref[...],
                    preferred_element_type=f32) + b3_ref[...]
    dists_ref[...] = dists.astype(dists_ref.dtype)             # [TN, CP]


# --------------------------------- wrapper ----------------------------------
_BUFFERED = getattr(pl, "Buffered", None)


def _const_spec(shape):
    """Constant-index weight/bias block.  Single-buffered: its block index never
    changes, so a second buffer buys zero overlap and doubles VMEM residency."""
    idx = lambda i: (0, 0)
    if _BUFFERED is not None:
        return pl.BlockSpec(shape, idx, pipeline_mode=_BUFFERED(1))
    return pl.BlockSpec(shape, idx)


def _pick_block_rows(n):
    """Largest multiple-of-8 divisor of n, capped at 256 (fills v6e/v7x MXU rows).

    No forced row split: on single-TC v5e/v6e extra grid steps are a sequential
    loop (per-step overhead, half MXU row occupancy); on v7x megacore splitting
    only pays once per-core row work amortizes the duplicated weight DMA, i.e.
    at much larger N than the synthetic sizes here."""
    assert n % 8 == 0, "pad object rows to a multiple of 8 before calling"
    tn = 8
    for cand in range(8, min(n, 256) + 1, 8):
        if n % cand == 0:
            tn = cand
    return tn


def linearized_context_forward(obj_logits, box_priors, kp, *, block_rows=None,
                               rep_dtype=jnp.float32):
    """Returns (obj_dists2 [N, C], obj_preds [N], obj_pre_rep [N, F])."""
    n, c = obj_logits.shape
    assert c == NUM_CLASSES
    tn = block_rows or _pick_block_rows(n)
    assert n % tn == 0
    grid = (n // tn,)

    # One fused, lane-dense per-row input slab: [logits | box | zero pad].
    # (merges the lane-sparse logits DMA and the 16-byte/row box DMA into a
    # single unmasked vld per grid step)
    inp = jnp.zeros((n, IN_PAD), jnp.float32)
    inp = inp.at[:, :c].set(obj_logits.astype(jnp.float32))
    inp = inp.at[:, c:c + 4].set(box_priors.astype(jnp.float32))

    out_shapes = (
        jax.ShapeDtypeStruct((n, CLASS_PAD), jnp.float32),     # padded obj_dists2
        jax.ShapeDtypeStruct((n, FUSION_DIM), rep_dtype),      # obj_pre_rep
    )

    dists_pad, rep = pl.pallas_call(
        _linearized_context_kernel,
        out_shape=out_shapes,
        grid_spec=pltpu.PrefetchScalarGridSpec(
            num_scalar_prefetch=0,
            grid=grid,
            in_specs=[
                pl.BlockSpec((tn, IN_PAD), lambda i: (i, 0)),            # fused input
                _const_spec((NUM_CLASSES, FUSION_DIM)),                  # fused embed weight
                _const_spec((4, POS_DIM)), _const_spec((1, POS_DIM)),    # pos linear
                _const_spec((POS_DIM, FUSION_DIM)),
                _const_spec((1, FUSION_DIM)),                            # fusion pos half
                _const_spec((FUSION_DIM, CLASS_PAD)),
                _const_spec((1, CLASS_PAD)),                             # decoder (padded)
            ],
            out_specs=[
                pl.BlockSpec((tn, CLASS_PAD), lambda i: (i, 0)),
                pl.BlockSpec((tn, FUSION_DIM), lambda i: (i, 0)),
            ],
        ),
        compiler_params=pltpu.CompilerParams(
            dimension_semantics=("parallel",),
            vmem_limit_bytes=32 * 1024 * 1024,
        ),
    )(
        inp,
        kp["wef"],
        kp["w1p"], kp["b1p"],
        kp["w2b"], kp["b2"],
        kp["w3p"], kp["b3p"],
    )

    dists = dists_pad[:, :NUM_CLASSES]
    # obj_preds = argmax(obj_dists2[:, 1:], 1) + 1  (wrapper side; no narrow
    # 1-lane store / in-kernel reduction needed).
    preds = jnp.argmax(dists[:, 1:], axis=1) + 1
    return dists, preds, rep


# ------------------------------ parameter setup ------------------------------
def make_raw_params(key):
    """Module-style parameters (embed table, BN stats, raw Linear weights)."""
    ks = jax.random.split(key, 16)
    rn = lambda k, shape, scale=0.05: (scale * jax.random.normal(k, shape)
                                       ).astype(jnp.float32)
    embed_w = rn(ks[0], (NUM_CLASSES, EMBED_DIM), 1.0)          # obj_edge_vectors

    bn1 = (1.0 + rn(ks[1], (4,)), rn(ks[2], (4,)),              # gamma, beta
           rn(ks[3], (4,), 10.0), 1.0 + jnp.abs(rn(ks[4], (4,), 2.0)))  # mean, var
    w1 = rn(ks[5], (4, POS_DIM), 0.2)
    b1 = rn(ks[6], (POS_DIM,), 0.1)

    din = EMBED_DIM + POS_DIM
    bn2 = (1.0 + rn(ks[7], (din,)), rn(ks[8], (din,)),
           rn(ks[9], (din,)), 1.0 + jnp.abs(rn(ks[10], (din,))))
    w2 = rn(ks[11], (din, FUSION_DIM), 0.05)
    b2 = rn(ks[12], (FUSION_DIM,), 0.05)

    w3 = rn(ks[13], (FUSION_DIM, NUM_CLASSES), 0.05)
    b3 = rn(ks[14], (NUM_CLASSES,), 0.05)
    return dict(embed_w=embed_w, bn1=bn1, w1=w1, b1=b1,
                bn2=bn2, w2=w2, b2=b2, w3=w3, b3=b3)


def _fold_bn(bn, w, b):
    """Eval-mode BatchNorm1d followed by Linear -> single affine (exact)."""
    gamma, beta, mean, var = bn
    s = gamma / jnp.sqrt(var + BN_EPS)
    return w * s[:, None], b + (beta - mean * s) @ w


def fold_params(raw, weight_dtype=jnp.float32):
    """Fold BN / center_size / embed matmul into kernel-side weights.

    `weight_dtype` (e.g. bf16) applies to the two large matmul weights (w2b, w3);
    the pre-fused embed weight wef = E @ W2a stays f32 to avoid compounding bf16
    rounding through the product (it is not the dominant weight), and all
    biases / the tiny pos weight stay f32 (VPU path)."""
    w1f, b1f = _fold_bn(raw["bn1"], raw["w1"], raw["b1"])
    w2f, b2f = _fold_bn(raw["bn2"], raw["w2"], raw["b2"])

    # center_size(box) = box @ A + c  (fixed affine), compose into the pos Linear.
    A = jnp.array([[0.5, 0.0, -1.0, 0.0],
                   [0.0, 0.5, 0.0, -1.0],
                   [0.5, 0.0, 1.0, 0.0],
                   [0.0, 0.5, 0.0, 1.0]], jnp.float32)
    c = jnp.array([0.5, 0.5, 1.0, 1.0], jnp.float32)
    w1p = A @ w1f
    b1p = b1f + c @ w1f

    # Split the fusion weight along the concat and pre-multiply the embed half.
    w2a = w2f[:EMBED_DIM]
    w2b = w2f[EMBED_DIM:]
    wef = raw["embed_w"] @ w2a                                  # [C, F]

    # Lane-dense decoder: pad columns out to CLASS_PAD.
    w3p = jnp.zeros((FUSION_DIM, CLASS_PAD), jnp.float32).at[:, :NUM_CLASSES].set(raw["w3"])
    b3p = jnp.zeros((CLASS_PAD,), jnp.float32).at[:NUM_CLASSES].set(raw["b3"])

    wd = weight_dtype   # big matmul weights only (activations/elementwise stay f32)
    return {
        "wef": wef,                                             # f32 (see docstring)
        "w1p": w1p, "b1p": b1p.reshape(1, POS_DIM),
        "w2b": w2b.astype(wd), "b2": b2f.reshape(1, FUSION_DIM),
        "w3p": w3p.astype(wd), "b3p": b3p.reshape(1, CLASS_PAD),
    }


# ------------------------------ pure-JAX reference ---------------------------
def reference_forward(obj_logits, box_priors, raw):
    """Mirrors the PyTorch module math (eval mode) without any folding."""
    def bn(x, params):
        gamma, beta, mean, var = params
        return (x - mean) / jnp.sqrt(var + BN_EPS) * gamma + beta

    p = jax.nn.softmax(obj_logits, axis=1)
    obj_embed = p @ raw["embed_w"]
    wh = box_priors[:, 2:] - box_priors[:, :2] + 1.0
    cs = jnp.concatenate([box_priors[:, :2] + 0.5 * wh, wh], axis=1)
    pos = jax.nn.relu(bn(cs, raw["bn1"]) @ raw["w1"] + raw["b1"])
    rep = jax.nn.relu(bn(jnp.concatenate([obj_embed, pos], axis=1), raw["bn2"])
                      @ raw["w2"] + raw["b2"])
    dists = rep @ raw["w3"] + raw["b3"]
    preds = jnp.argmax(dists[:, 1:], axis=1) + 1
    return dists, preds, rep


def _max_scaled_err(a, b):
    a = np.asarray(a, np.float32)
    b = np.asarray(b, np.float32)
    return float(np.max(np.abs(a - b)) / max(float(np.max(np.abs(b))), 1e-6))


# ----------------------------------- main ------------------------------------
if __name__ == "__main__":
    key = jax.random.PRNGKey(0)
    k_logit, k_box, k_par = jax.random.split(key, 3)

    obj_logits = jax.random.normal(k_logit, (N, NUM_CLASSES), jnp.float32)
    xy1 = 100.0 * jax.random.uniform(k_box, (N, 2))
    wh = 1.0 + 50.0 * jax.random.uniform(jax.random.fold_in(k_box, 1), (N, 2))
    box_priors = jnp.concatenate([xy1, xy1 + wh], axis=1).astype(jnp.float32)

    raw = make_raw_params(k_par)
    ref_dists, ref_preds, ref_rep = reference_forward(obj_logits, box_priors, raw)

    # ---- f32 weights: tight elementwise check --------------------------------
    kp32 = fold_params(raw, jnp.float32)
    dists, preds, rep = jax.block_until_ready(
        linearized_context_forward(obj_logits, box_priors, kp32))
    np.testing.assert_allclose(np.asarray(dists), np.asarray(ref_dists),
                               rtol=2e-3, atol=2e-3)
    np.testing.assert_allclose(np.asarray(rep), np.asarray(ref_rep),
                               rtol=2e-3, atol=2e-3)
    # preds must match except on true near-ties (f32 accumulation-order only,
    # now that the softmax reciprocal is exact).
    top2 = np.sort(np.asarray(ref_dists)[:, 1:], axis=1)
    gap = top2[:, -1] - top2[:, -2]
    ok = (np.asarray(preds) == np.asarray(ref_preds)) | (gap < 1e-3)
    assert ok.all(), "obj_preds mismatch beyond near-tie tolerance"

    # ---- bf16 big-matmul weights (valid on v5e/v6e/v7x MXU): scale-aware check
    kpbf = fold_params(raw, jnp.bfloat16)
    dists_bf, preds_bf, rep_bf = jax.block_until_ready(
        linearized_context_forward(obj_logits, box_priors, kpbf))
    assert _max_scaled_err(dists_bf, ref_dists) < 3e-2
    assert _max_scaled_err(rep_bf, ref_rep) < 3e-2

    print("KERNEL_OK")
</pallas_src>

<mosaic_0001>
module attributes {stable_mosaic.version = 11 : i64} {
  func.func @_linearized_context_kernel(%arg0: i32, %arg1: memref<64x128xf32, #tpu.memory_space<vmem>>, %arg2: memref<32x256xf32, #tpu.memory_space<vmem>>, %arg3: memref<4x128xf32, #tpu.memory_space<vmem>>, %arg4: memref<1x128xf32, #tpu.memory_space<vmem>>, %arg5: memref<128x256xf32, #tpu.memory_space<vmem>>, %arg6: memref<1x256xf32, #tpu.memory_space<vmem>>, %arg7: memref<256x128xf32, #tpu.memory_space<vmem>>, %arg8: memref<1x128xf32, #tpu.memory_space<vmem>>, %arg9: memref<64x128xf32, #tpu.memory_space<vmem>>, %arg10: memref<64x256xf32, #tpu.memory_space<vmem>>) attributes {dimension_semantics = [#tpu.dimension_semantics<parallel>], iteration_bounds = array<i64: 1>, scalar_prefetch = 0 : i64, scratch_operands = 0 : i64, tpu.core_type = #tpu.core_type<tc>, window_params = [{transform_indices = @transform_0, window_bounds = array<i64: 64, 128>}, {pipeline_mode = #tpu.pipeline_mode<synchronous>, transform_indices = @transform_1, window_bounds = array<i64: 32, 256>}, {pipeline_mode = #tpu.pipeline_mode<synchronous>, transform_indices = @transform_2, window_bounds = array<i64: 4, 128>}, {pipeline_mode = #tpu.pipeline_mode<synchronous>, transform_indices = @transform_3, window_bounds = array<i64: 1, 128>}, {pipeline_mode = #tpu.pipeline_mode<synchronous>, transform_indices = @transform_4, window_bounds = array<i64: 128, 256>}, {pipeline_mode = #tpu.pipeline_mode<synchronous>, transform_indices = @transform_5, window_bounds = array<i64: 1, 256>}, {pipeline_mode = #tpu.pipeline_mode<synchronous>, transform_indices = @transform_6, window_bounds = array<i64: 256, 128>}, {pipeline_mode = #tpu.pipeline_mode<synchronous>, transform_indices = @transform_7, window_bounds = array<i64: 1, 128>}, {transform_indices = @transform_8, window_bounds = array<i64: 64, 128>}, {transform_indices = @transform_9, window_bounds = array<i64: 64, 256>}]} {
    %c0 = arith.constant 0 : index
    %c0_0 = arith.constant 0 : index
    %0 = vector.load %arg1[%c0, %c0_0] : memref<64x128xf32, #tpu.memory_space<vmem>>, vector<64x128xf32>
    %1 = vector.extract_strided_slice %0 {offsets = [0, 0], sizes = [64, 32], strides = [1, 1]} : vector<64x128xf32> to vector<64x32xf32>
    %cst = arith.constant dense<0xFF800000> : vector<64xf32>
    %2 = vector.multi_reduction <maximumf>, %1, %cst [1] : vector<64x32xf32> to vector<64xf32>
    %3 = vector.shape_cast %2 : vector<64xf32> to vector<64x1xf32>
    %4 = vector.broadcast %3 : vector<64x1xf32> to vector<64x32xf32>
    %5 = arith.subf %1, %4 : vector<64x32xf32>
    %6 = math.exp %5 : vector<64x32xf32>
    %cst_1 = arith.constant dense<0.000000e+00> : vector<64xf32>
    %7 = vector.multi_reduction <add>, %6, %cst_1 [1] : vector<64x32xf32> to vector<64xf32>
    %8 = vector.shape_cast %7 : vector<64xf32> to vector<64x1xf32>
    %9 = vector.broadcast %8 : vector<64x1xf32> to vector<64x32xf32>
    %10 = arith.divf %6, %9 : vector<64x32xf32>
    %c0_2 = arith.constant 0 : index
    %c0_3 = arith.constant 0 : index
    %11 = vector.load %arg2[%c0_2, %c0_3] : memref<32x256xf32, #tpu.memory_space<vmem>>, vector<32x256xf32>
    %cst_4 = arith.constant dense<0.000000e+00> : vector<64x256xf32>
    %12 = tpu.matmul %10, %11, %cst_4 {dimension_numbers = #tpu.dot_dimension_numbers<[1], [0], [0], [1], [0, 0, 1, 1], [], []>} : vector<64x32xf32>, vector<32x256xf32>, vector<64x256xf32> -> vector<64x256xf32>
    %c0_5 = arith.constant 0 : index
    %c0_6 = arith.constant 0 : index
    %13 = vector.load %arg4[%c0_5, %c0_6] : memref<1x128xf32, #tpu.memory_space<vmem>>, vector<1x128xf32>
    %14 = vector.shape_cast %13 : vector<1x128xf32> to vector<1x128xf32>
    %15 = vector.broadcast %14 : vector<1x128xf32> to vector<64x128xf32>
    %16 = vector.extract_strided_slice %0 {offsets = [0, 32], sizes = [64, 1], strides = [1, 1]} : vector<64x128xf32> to vector<64x1xf32>
    %c0_7 = arith.constant 0 : index
    %c0_8 = arith.constant 0 : index
    %17 = vector.load %arg3[%c0_7, %c0_8] : memref<4x128xf32, #tpu.memory_space<vmem>>, vector<1x128xf32>
    %18 = vector.broadcast %16 : vector<64x1xf32> to vector<64x128xf32>
    %19 = vector.broadcast %17 : vector<1x128xf32> to vector<64x128xf32>
    %20 = arith.mulf %18, %19 : vector<64x128xf32>
    %21 = arith.addf %15, %20 : vector<64x128xf32>
    %22 = vector.extract_strided_slice %0 {offsets = [0, 33], sizes = [64, 1], strides = [1, 1]} : vector<64x128xf32> to vector<64x1xf32>
    %c1 = arith.constant 1 : index
    %c0_9 = arith.constant 0 : index
    %23 = vector.load %arg3[%c1, %c0_9] : memref<4x128xf32, #tpu.memory_space<vmem>>, vector<1x128xf32>
    %24 = vector.broadcast %22 : vector<64x1xf32> to vector<64x128xf32>
    %25 = vector.broadcast %23 : vector<1x128xf32> to vector<64x128xf32>
    %26 = arith.mulf %24, %25 : vector<64x128xf32>
    %27 = arith.addf %21, %26 : vector<64x128xf32>
    %28 = vector.extract_strided_slice %0 {offsets = [0, 34], sizes = [64, 1], strides = [1, 1]} : vector<64x128xf32> to vector<64x1xf32>
    %c2 = arith.constant 2 : index
    %c0_10 = arith.constant 0 : index
    %29 = vector.load %arg3[%c2, %c0_10] : memref<4x128xf32, #tpu.memory_space<vmem>>, vector<1x128xf32>
    %30 = vector.broadcast %28 : vector<64x1xf32> to vector<64x128xf32>
    %31 = vector.broadcast %29 : vector<1x128xf32> to vector<64x128xf32>
    %32 = arith.mulf %30, %31 : vector<64x128xf32>
    %33 = arith.addf %27, %32 : vector<64x128xf32>
    %34 = vector.extract_strided_slice %0 {offsets = [0, 35], sizes = [64, 1], strides = [1, 1]} : vector<64x128xf32> to vector<64x1xf32>
    %c3 = arith.constant 3 : index
    %c0_11 = arith.constant 0 : index
    %35 = vector.load %arg3[%c3, %c0_11] : memref<4x128xf32, #tpu.memory_space<vmem>>, vector<1x128xf32>
    %36 = vector.broadcast %34 : vector<64x1xf32> to vector<64x128xf32>
    %37 = vector.broadcast %35 : vector<1x128xf32> to vector<64x128xf32>
    %38 = arith.mulf %36, %37 : vector<64x128xf32>
    %39 = arith.addf %33, %38 : vector<64x128xf32>
    %cst_12 = arith.constant 0.000000e+00 : f32
    %40 = vector.broadcast %cst_12 : f32 to vector<64x128xf32>
    %41 = arith.maximumf %39, %40 : vector<64x128xf32>
    %c0_13 = arith.constant 0 : index
    %c0_14 = arith.constant 0 : index
    %42 = vector.load %arg5[%c0_13, %c0_14] : memref<128x256xf32, #tpu.memory_space<vmem>>, vector<128x256xf32>
    %cst_15 = arith.constant dense<0.000000e+00> : vector<64x256xf32>
    %43 = tpu.matmul %41, %42, %cst_15 {dimension_numbers = #tpu.dot_dimension_numbers<[1], [0], [0], [1], [0, 0, 1, 1], [], []>} : vector<64x128xf32>, vector<128x256xf32>, vector<64x256xf32> -> vector<64x256xf32>
    %44 = arith.addf %12, %43 : vector<64x256xf32>
    %c0_16 = arith.constant 0 : index
    %c0_17 = arith.constant 0 : index
    %45 = vector.load %arg6[%c0_16, %c0_17] : memref<1x256xf32, #tpu.memory_space<vmem>>, vector<1x256xf32>
    %46 = vector.broadcast %45 : vector<1x256xf32> to vector<64x256xf32>
    %47 = arith.addf %44, %46 : vector<64x256xf32>
    %cst_18 = arith.constant 0.000000e+00 : f32
    %48 = vector.broadcast %cst_18 : f32 to vector<64x256xf32>
    %49 = arith.maximumf %47, %48 : vector<64x256xf32>
    %c0_19 = arith.constant 0 : index
    %c0_20 = arith.constant 0 : index
    %50 = vector.load %arg10[%c0_19, %c0_20] : memref<64x256xf32, #tpu.memory_space<vmem>>, vector<64x256xf32>
    tpu.vector_store %arg10[%c0_19, %c0_20], %49 {strides = array<i32>} : memref<64x256xf32, #tpu.memory_space<vmem>>, vector<64x256xf32>,
    %c0_21 = arith.constant 0 : index
    %c0_22 = arith.constant 0 : index
    %51 = vector.load %arg7[%c0_21, %c0_22] : memref<256x128xf32, #tpu.memory_space<vmem>>, vector<256x128xf32>
    %cst_23 = arith.constant dense<0.000000e+00> : vector<64x128xf32>
    %52 = tpu.matmul %49, %51, %cst_23 {dimension_numbers = #tpu.dot_dimension_numbers<[1], [0], [0], [1], [0, 0, 1, 1], [], []>} : vector<64x256xf32>, vector<256x128xf32>, vector<64x128xf32> -> vector<64x128xf32>
    %c0_24 = arith.constant 0 : index
    %c0_25 = arith.constant 0 : index
    %53 = vector.load %arg8[%c0_24, %c0_25] : memref<1x128xf32, #tpu.memory_space<vmem>>, vector<1x128xf32>
    %54 = vector.broadcast %53 : vector<1x128xf32> to vector<64x128xf32>
    %55 = arith.addf %52, %54 : vector<64x128xf32>
    %c0_26 = arith.constant 0 : index
    %c0_27 = arith.constant 0 : index
    %56 = vector.load %arg9[%c0_26, %c0_27] : memref<64x128xf32, #tpu.memory_space<vmem>>, vector<64x128xf32>
    tpu.vector_store %arg9[%c0_26, %c0_27], %55 {strides = array<i32>} : memref<64x128xf32, #tpu.memory_space<vmem>>, vector<64x128xf32>,
    return
  }
  func.func @transform_0(%arg0: i32) -> (i32, i32) {
    %c0_i32 = arith.constant 0 : i32
    %c0_i32_0 = arith.constant 0 : i32
    return %arg0, %c0_i32 : i32, i32
  }
  func.func @transform_1(%arg0: i32) -> (i32, i32) {
    %c0_i32 = arith.constant 0 : i32
    %c0_i32_0 = arith.constant 0 : i32
    %c0_i32_1 = arith.constant 0 : i32
    return %c0_i32, %c0_i32_0 : i32, i32
  }
  func.func @transform_2(%arg0: i32) -> (i32, i32) {
    %c0_i32 = arith.constant 0 : i32
    %c0_i32_0 = arith.constant 0 : i32
    %c0_i32_1 = arith.constant 0 : i32
    return %c0_i32, %c0_i32_0 : i32, i32
  }
  func.func @transform_3(%arg0: i32) -> (i32, i32) {
    %c0_i32 = arith.constant 0 : i32
    %c0_i32_0 = arith.constant 0 : i32
    %c0_i32_1 = arith.constant 0 : i32
    return %c0_i32, %c0_i32_0 : i32, i32
  }
  func.func @transform_4(%arg0: i32) -> (i32, i32) {
    %c0_i32 = arith.constant 0 : i32
    %c0_i32_0 = arith.constant 0 : i32
    %c0_i32_1 = arith.constant 0 : i32
    return %c0_i32, %c0_i32_0 : i32, i32
  }
  func.func @transform_5(%arg0: i32) -> (i32, i32) {
    %c0_i32 = arith.constant 0 : i32
    %c0_i32_0 = arith.constant 0 : i32
    %c0_i32_1 = arith.constant 0 : i32
    return %c0_i32, %c0_i32_0 : i32, i32
  }
  func.func @transform_6(%arg0: i32) -> (i32, i32) {
    %c0_i32 = arith.constant 0 : i32
    %c0_i32_0 = arith.constant 0 : i32
    %c0_i32_1 = arith.constant 0 : i32
    return %c0_i32, %c0_i32_0 : i32, i32
  }
  func.func @transform_7(%arg0: i32) -> (i32, i32) {
    %c0_i32 = arith.constant 0 : i32
    %c0_i32_0 = arith.constant 0 : i32
    %c0_i32_1 = arith.constant 0 : i32
    return %c0_i32, %c0_i32_0 : i32, i32
  }
  func.func @transform_8(%arg0: i32) -> (i32, i32) {
    %c0_i32 = arith.constant 0 : i32
    %c0_i32_0 = arith.constant 0 : i32
    return %arg0, %c0_i32 : i32, i32
  }
  func.func @transform_9(%arg0: i32) -> (i32, i32) {
    %c0_i32 = arith.constant 0 : i32
    %c0_i32_0 = arith.constant 0 : i32
    return %arg0, %c0_i32 : i32, i32
  }
}

</mosaic_0001>

<llo_original>
// kernel: tpu_custom_call.1
$region0: #{tpu_custom_call.1}
  #allocation0 [shape = 'u32[]', space=smem, size = 0x4, offset = 0x4, fixed_abs, tag = 'smem constant byte address 0x4 - core index']
  #allocation1 [shape = 'u32[72,128]{1,0:T(1,128)}', space=vmem, size = 0x9000, scoped, tag = 'internal scratch']
  %s0 = inlined_call_operand.hbm [shape: f32[64,128], index: 0, kind: input, shape index: {}]
  %s1 = inlined_call_operand.hbm [shape: f32[32,256], index: 1, kind: input, shape index: {}]
  %s2 = inlined_call_operand.hbm [shape: f32[4,128], index: 2, kind: input, shape index: {}]
  %s3 = inlined_call_operand.vmem [shape: f32[1,128], index: 3, kind: input, shape index: {}]
  %s4 = inlined_call_operand.hbm [shape: f32[128,256], index: 4, kind: input, shape index: {}]
  %s5 = inlined_call_operand.vmem [shape: f32[1,256], index: 5, kind: input, shape index: {}]
  %s6 = inlined_call_operand.hbm [shape: f32[256,128], index: 6, kind: input, shape index: {}]
  %s7 = inlined_call_operand.vmem [shape: f32[1,128], index: 7, kind: input, shape index: {}]
  %s8 = inlined_call_operand.hbm [shape: f32[64,128], index: 8, kind: output, shape index: {0}]
  %s9 = inlined_call_operand.hbm [shape: f32[64,256], index: 9, kind: output, shape index: {1}]
  %10 = xla_tuple %s8, %s9
  %s11 = sld [smem:[#allocation0]]
  $region70: #{tpu_custom_call.1} parent=0
    _
  %s13 = ssub.s32 1, %s11
  %s14 = scalar_select 0, %s13, %s11
  $region1: #{tpu_custom_call.1} parent=0
    #allocation2 [shape = 'u8[32768]{0}', space=vmem, size = 0x8000, scoped, tag = 'input window, operand 0, single buffered']
    #allocation3 [shape = 's32[1]{0}', space=sflag, size = 0x4, scoped, tag = 'scoped memory for tpu_custom_call.1']
    #allocation4 [shape = 's32[1]{0}', space=sflag, size = 0x4, scoped, tag = 'scoped memory for tpu_custom_call.1']
    #allocation5 [shape = 'u8[32768]{0}', space=vmem, size = 0x8000, scoped, tag = 'input window, operand 1, single buffered']
    #allocation6 [shape = 's32[1]{0}', space=sflag, size = 0x4, scoped, tag = 'scoped memory for tpu_custom_call.1']
    #allocation7 [shape = 'u8[2048]{0}', space=vmem, size = 0x800, scoped, tag = 'input window, operand 2, single buffered']
    #allocation8 [shape = 'u8[131072]{0}', space=vmem, size = 0x20000, scoped, tag = 'input window, operand 4, single buffered']
    #allocation9 [shape = 's32[1]{0}', space=sflag, size = 0x4, scoped, tag = 'scoped memory for tpu_custom_call.1']
    #allocation10 [shape = 'u8[131072]{0}', space=vmem, size = 0x20000, scoped, tag = 'input window, operand 6, single buffered']
    #allocation11 [shape = 'u8[32768]{0}', space=vmem, size = 0x8000, scoped, tag = 'output window, operand 0, single buffered']
    #allocation12 [shape = 'u8[65536]{0}', space=vmem, size = 0x10000, scoped, tag = 'output window, operand 1, single buffered']
    #allocation13 [shape = 's32[1]{0}', space=sflag, size = 0x4, scoped, tag = 'scoped memory for tpu_custom_call.1']
    %15 = vsyncpa [#allocation3], 0
    %16 = vsyncpa [#allocation6], 0
    %17 = vsyncpa [#allocation9], 0
    %18 = vsyncpa [#allocation4], 0
    %19 = vsyncpa [#allocation13], 0
    // Predicated region
    $region2: #{tpu_custom_call.1} parent=1 // pred_check
      _
    $region3: #{tpu_custom_call.1} parent=1 // pred_check_branch
      %21 = sbr.rel (0) target = $region5
    $region4: #{tpu_custom_call.1} parent=1 // pred_region
      %23 = vsyncadd [#allocation3], 0
      %s24 = sshll.u32 %s0, 4
      %s25 = int_to_ptr.hbm [resolvable:$true] %s24
      %s26 = sshll.u32 [#allocation2], 4
      %s27 = int_to_ptr.vmem [resolvable:$true] %s26
      %32 = dma.hbm_to_vmem [thread:$0]  %s25, 1024, %s27, [#allocation3], 128, 128, 8
    $region5: #{tpu_custom_call.1} parent=1 // pred_fallthru
      _
    // Predicated region
    $region6: #{tpu_custom_call.1} parent=1 // pred_check
      _
    $region7: #{tpu_custom_call.1} parent=1 // pred_check_branch
      %34 = sbr.rel (0) target = $region9
    $region8: #{tpu_custom_call.1} parent=1 // pred_region
      %36 = vsyncadd [#allocation6], 0
      %s37 = sshll.u32 %s1, 4
      %s38 = int_to_ptr.hbm [resolvable:$true] %s37
      %s39 = sshll.u32 [#allocation5], 4
      %s40 = int_to_ptr.vmem [resolvable:$true] %s39
      %45 = dma.hbm_to_vmem [thread:$0]  %s38, 1024, %s40, [#allocation6], 256, 256, 16
    $region9: #{tpu_custom_call.1} parent=1 // pred_fallthru
      _
    // Predicated region
    $region10: #{tpu_custom_call.1} parent=1 // pred_check
      _
    $region11: #{tpu_custom_call.1} parent=1 // pred_check_branch
      %47 = sbr.rel (0) target = $region13
    $region12: #{tpu_custom_call.1} parent=1 // pred_region
      %49 = vsyncadd [#allocation6], 0
      %s51 = sshll.u32 %s2, 4
      %s52 = int_to_ptr.hbm [resolvable:$true] %s51
      %s53 = sshll.u32 [#allocation7], 4
      %s54 = int_to_ptr.vmem [resolvable:$true] %s53
      %56 = dma.hbm_to_vmem [thread:$0]  %s52, 64, %s54, [#allocation6]
    $region13: #{tpu_custom_call.1} parent=1 // pred_fallthru
      _
    // Predicated region
    $region14: #{tpu_custom_call.1} parent=1 // pred_check
      _
    $region15: #{tpu_custom_call.1} parent=1 // pred_check_branch
      %58 = sbr.rel (0) target = $region17
    $region16: #{tpu_custom_call.1} parent=1 // pred_region
      _
    $region17: #{tpu_custom_call.1} parent=1 // pred_fallthru
      _
    // Predicated region
    $region18: #{tpu_custom_call.1} parent=1 // pred_check
      _
    $region19: #{tpu_custom_call.1} parent=1 // pred_check_branch
      %60 = sbr.rel (0) target = $region21
    $region20: #{tpu_custom_call.1} parent=1 // pred_region
      %62 = vsyncadd [#allocation9], 0
      %s63 = sshll.u32 %s4, 4
      %s64 = int_to_ptr.hbm [resolvable:$true] %s63
      %s65 = sshll.u32 [#allocation8], 4
      %s66 = int_to_ptr.vmem [resolvable:$true] %s65
      %71 = dma.hbm_to_vmem [thread:$0]  %s64, 4096, %s66, [#allocation9], 256, 256, 16
    $region21: #{tpu_custom_call.1} parent=1 // pred_fallthru
      _
    // Predicated region
    $region22: #{tpu_custom_call.1} parent=1 // pred_check
      _
    $region23: #{tpu_custom_call.1} parent=1 // pred_check_branch
      %73 = sbr.rel (0) target = $region25
    $region24: #{tpu_custom_call.1} parent=1 // pred_region
      _
    $region25: #{tpu_custom_call.1} parent=1 // pred_fallthru
      _
    // Predicated region
    $region26: #{tpu_custom_call.1} parent=1 // pred_check
      _
    $region27: #{tpu_custom_call.1} parent=1 // pred_check_branch
      %75 = sbr.rel (0) target = $region29
    $region28: #{tpu_custom_call.1} parent=1 // pred_region
      %77 = vsyncadd [#allocation9], 0
      %s78 = sshll.u32 %s6, 4
      %s79 = int_to_ptr.hbm [resolvable:$true] %s78
      %s80 = sshll.u32 [#allocation10], 4
      %s81 = int_to_ptr.vmem [resolvable:$true] %s80
      %86 = dma.hbm_to_vmem [thread:$0]  %s79, 4096, %s81, [#allocation9], 128, 128, 8
    $region29: #{tpu_custom_call.1} parent=1 // pred_fallthru
      _
    // Predicated region
    $region30: #{tpu_custom_call.1} parent=1 // pred_check
      _
    $region31: #{tpu_custom_call.1} parent=1 // pred_check_branch
      %88 = sbr.rel (0) target = $region33
    $region32: #{tpu_custom_call.1} parent=1 // pred_region
      _
    $region33: #{tpu_custom_call.1} parent=1 // pred_fallthru
      _
    // Predicated region
    $region34: #{tpu_custom_call.1} parent=1 // pred_check
      _
    $region35: #{tpu_custom_call.1} parent=1 // pred_check_branch
      %90 = sbr.rel (0) target = $region37
    $region36: #{tpu_custom_call.1} parent=1 // pred_region
      %92 = dma.done [#allocation3], 1024
    $region37: #{tpu_custom_call.1} parent=1 // pred_fallthru
      _
    // Predicated region
    $region38: #{tpu_custom_call.1} parent=1 // pred_check
      _
    $region39: #{tpu_custom_call.1} parent=1 // pred_check_branch
      %94 = sbr.rel (0) target = $region41
    $region40: #{tpu_custom_call.1} parent=1 // pred_region
      %96 = dma.done [#allocation6], 1024
    $region41: #{tpu_custom_call.1} parent=1 // pred_fallthru
      _
    // Predicated region
    $region42: #{tpu_custom_call.1} parent=1 // pred_check
      _
    $region43: #{tpu_custom_call.1} parent=1 // pred_check_branch
      %98 = sbr.rel (0) target = $region45
    $region44: #{tpu_custom_call.1} parent=1 // pred_region
      %100 = dma.done [#allocation6], 64
    $region45: #{tpu_custom_call.1} parent=1 // pred_fallthru
      _
    // Predicated region
    $region46: #{tpu_custom_call.1} parent=1 // pred_check
      _
    $region47: #{tpu_custom_call.1} parent=1 // pred_check_branch
      %102 = sbr.rel (0) target = $region49
    $region48: #{tpu_custom_call.1} parent=1 // pred_region
      %104 = dma.done [#allocation9], 4096
    $region49: #{tpu_custom_call.1} parent=1 // pred_fallthru
      _
    // Predicated region
    $region50: #{tpu_custom_call.1} parent=1 // pred_check
      _
    $region51: #{tpu_custom_call.1} parent=1 // pred_check_branch
      %106 = sbr.rel (0) target = $region53
    $region52: #{tpu_custom_call.1} parent=1 // pred_region
      %108 = dma.done [#allocation9], 4096
    $region53: #{tpu_custom_call.1} parent=1 // pred_fallthru
      _
    %v109 = vld [vmem:[#allocation2] sm:$0xff]
    %v110 = vld [vmem:[#allocation2 + $0x8] sm:$0xff]
    %v111 = vld [vmem:[#allocation2 + $0x10] sm:$0xff]
    %v112 = vld [vmem:[#allocation2 + $0x18] sm:$0xff]
    %v113 = vld [vmem:[#allocation2 + $0x20] sm:$0xff]
    %v114 = vld [vmem:[#allocation2 + $0x28] sm:$0xff]
    %v115 = vld [vmem:[#allocation2 + $0x30] sm:$0xff]
    %v116 = vld [vmem:[#allocation2 + $0x38] sm:$0xff]
    %vm117 = vcmask 261120
    %v118 = vsel %vm117, %v109, -inf
    %119 = vmax.xlane.f32.xlu0 %v118
    %v120 = vpop.xlane.xlu0 %119
    %v121 = vsel %vm117, %v110, -inf
    %122 = vmax.xlane.f32.xlu0 %v121
    %v123 = vpop.xlane.xlu0 %122
    %v124 = vsel %vm117, %v111, -inf
    %125 = vmax.xlane.f32.xlu0 %v124
    %v126 = vpop.xlane.xlu0 %125
    %v127 = vsel %vm117, %v112, -inf
    %128 = vmax.xlane.f32.xlu0 %v127
    %v129 = vpop.xlane.xlu0 %128
    %v130 = vsel %vm117, %v113, -inf
    %131 = vmax.xlane.f32.xlu0 %v130
    %v132 = vpop.xlane.xlu0 %131
    %v133 = vsel %vm117, %v114, -inf
    %134 = vmax.xlane.f32.xlu0 %v133
    %v135 = vpop.xlane.xlu0 %134
    %v136 = vsel %vm117, %v115, -inf
    %137 = vmax.xlane.f32.xlu0 %v136
    %v138 = vpop.xlane.xlu0 %137
    %v139 = vsel %vm117, %v116, -inf
    %140 = vmax.xlane.f32.xlu0 %v139
    %v141 = vpop.xlane.xlu0 %140
    %v142 = vsub.f32 %v109, %v120
    %v143 = vsub.f32 %v110, %v123
    %v144 = vsub.f32 %v111, %v126
    %v145 = vsub.f32 %v112, %v129
    %v146 = vsub.f32 %v113, %v132
    %v147 = vsub.f32 %v114, %v135
    %v148 = vsub.f32 %v115, %v138
    %v149 = vsub.f32 %v116, %v141
    %v150 = vmul.f32 %v142, 1.442695
    %v151 = vpow.pop %v150
    %v152 = vmul.f32 %v143, 1.442695
    %v153 = vpow.pop %v152
    %v154 = vmul.f32 %v144, 1.442695
    %v155 = vpow.pop %v154
    %v156 = vmul.f32 %v145, 1.442695
    %v157 = vpow.pop %v156
    %v158 = vmul.f32 %v146, 1.442695
    %v159 = vpow.pop %v158
    %v160 = vmul.f32 %v147, 1.442695
    %v161 = vpow.pop %v160
    %v162 = vmul.f32 %v148, 1.442695
    %v163 = vpow.pop %v162
    %v164 = vmul.f32 %v149, 1.442695
    %v165 = vpow.pop %v164
    %v166 = vsel %vm117, %v151, 0.0
    %167 = vadd.xlane.f32.xlu0 %v166
    %v168 = vpop.xlane.xlu0 %167
    %v169 = vsel %vm117, %v153, 0.0
    %170 = vadd.xlane.f32.xlu0 %v169
    %v171 = vpop.xlane.xlu0 %170
    %v172 = vsel %vm117, %v155, 0.0
    %173 = vadd.xlane.f32.xlu0 %v172
    %v174 = vpop.xlane.xlu0 %173
    %v175 = vsel %vm117, %v157, 0.0
    %176 = vadd.xlane.f32.xlu0 %v175
    %v177 = vpop.xlane.xlu0 %176
    %v178 = vsel %vm117, %v159, 0.0
    %179 = vadd.xlane.f32.xlu0 %v178
    %v180 = vpop.xlane.xlu0 %179
    %v181 = vsel %vm117, %v161, 0.0
    %182 = vadd.xlane.f32.xlu0 %v181
    %v183 = vpop.xlane.xlu0 %182
    %v184 = vsel %vm117, %v163, 0.0
    %185 = vadd.xlane.f32.xlu0 %v184
    %v186 = vpop.xlane.xlu0 %185
    %v187 = vsel %vm117, %v165, 0.0
    %188 = vadd.xlane.f32.xlu0 %v187
    %v189 = vpop.xlane.xlu0 %188
    %v190 = vrcp.pop %v168
    %v191 = vmul.f32 %v168, %v190
    %v192 = vsub.f32 1.0, %v191
    %v193 = vmul.f32 %v190, %v192
    %v194 = vadd.f32 %v190, %v193
    %vm195 = vweird.f32 %v168
    %vm196 = vweird.f32 %v190
    %vm197 = vmor %vm195, %vm196
    %v198 = vsel %vm197, %v190, %v194
    %v199 = vand.u32 2147483647, %v168
    %vm200 = vcmp.eq.f32.partialorder %v199, 8.507059e+37
    %v201 = vand.u32 %v168, 2147483648
    %v202 = vor.u32 1.1754944e-38, %v201
    %v203 = vsel %vm200, %v202, %v198
    %v204 = vmul.f32 %v151, %v203
    %v205 = vrcp.pop %v171
    %v206 = vmul.f32 %v171, %v205
    %v207 = vsub.f32 1.0, %v206
    %v208 = vmul.f32 %v205, %v207
    %v209 = vadd.f32 %v205, %v208
    %vm210 = vweird.f32 %v171
    %vm211 = vweird.f32 %v205
    %vm212 = vmor %vm210, %vm211
    %v213 = vsel %vm212, %v205, %v209
    %v214 = vand.u32 2147483647, %v171
    %vm215 = vcmp.eq.f32.partialorder %v214, 8.507059e+37
    %v216 = vand.u32 %v171, 2147483648
    %v217 = vor.u32 1.1754944e-38, %v216
    %v218 = vsel %vm215, %v217, %v213
    %v219 = vmul.f32 %v153, %v218
    %v220 = vrcp.pop %v174
    %v221 = vmul.f32 %v174, %v220
    %v222 = vsub.f32 1.0, %v221
    %v223 = vmul.f32 %v220, %v222
    %v224 = vadd.f32 %v220, %v223
    %vm225 = vweird.f32 %v174
    %vm226 = vweird.f32 %v220
    %vm227 = vmor %vm225, %vm226
    %v228 = vsel %vm227, %v220, %v224
    %v229 = vand.u32 2147483647, %v174
    %vm230 = vcmp.eq.f32.partialorder %v229, 8.507059e+37
    %v231 = vand.u32 %v174, 2147483648
    %v232 = vor.u32 1.1754944e-38, %v231
    %v233 = vsel %vm230, %v232, %v228
    %v234 = vmul.f32 %v155, %v233
    %v235 = vrcp.pop %v177
    %v236 = vmul.f32 %v177, %v235
    %v237 = vsub.f32 1.0, %v236
    %v238 = vmul.f32 %v235, %v237
    %v239 = vadd.f32 %v235, %v238
    %vm240 = vweird.f32 %v177
    %vm241 = vweird.f32 %v235
    %vm242 = vmor %vm240, %vm241
    %v243 = vsel %vm242, %v235, %v239
    %v244 = vand.u32 2147483647, %v177
    %vm245 = vcmp.eq.f32.partialorder %v244, 8.507059e+37
    %v246 = vand.u32 %v177, 2147483648
    %v247 = vor.u32 1.1754944e-38, %v246
    %v248 = vsel %vm245, %v247, %v243
    %v249 = vmul.f32 %v157, %v248
    %v250 = vrcp.pop %v180
    %v251 = vmul.f32 %v180, %v250
    %v252 = vsub.f32 1.0, %v251
    %v253 = vmul.f32 %v250, %v252
    %v254 = vadd.f32 %v250, %v253
    %vm255 = vweird.f32 %v180
    %vm256 = vweird.f32 %v250
    %vm257 = vmor %vm255, %vm256
    %v258 = vsel %vm257, %v250, %v254
    %v259 = vand.u32 2147483647, %v180
    %vm260 = vcmp.eq.f32.partialorder %v259, 8.507059e+37
    %v261 = vand.u32 %v180, 2147483648
    %v262 = vor.u32 1.1754944e-38, %v261
    %v263 = vsel %vm260, %v262, %v258
    %v264 = vmul.f32 %v159, %v263
    %v265 = vrcp.pop %v183
    %v266 = vmul.f32 %v183, %v265
    %v267 = vsub.f32 1.0, %v266
    %v268 = vmul.f32 %v265, %v267
    %v269 = vadd.f32 %v265, %v268
    %vm270 = vweird.f32 %v183
    %vm271 = vweird.f32 %v265
    %vm272 = vmor %vm270, %vm271
    %v273 = vsel %vm272, %v265, %v269
    %v274 = vand.u32 2147483647, %v183
    %vm275 = vcmp.eq.f32.partialorder %v274, 8.507059e+37
    %v276 = vand.u32 %v183, 2147483648
    %v277 = vor.u32 1.1754944e-38, %v276
    %v278 = vsel %vm275, %v277, %v273
    %v279 = vmul.f32 %v161, %v278
    %v280 = vrcp.pop %v186
    %v281 = vmul.f32 %v186, %v280
    %v282 = vsub.f32 1.0, %v281
    %v283 = vmul.f32 %v280, %v282
    %v284 = vadd.f32 %v280, %v283
    %vm285 = vweird.f32 %v186
    %vm286 = vweird.f32 %v280
    %vm287 = vmor %vm285, %vm286
    %v288 = vsel %vm287, %v280, %v284
    %v289 = vand.u32 2147483647, %v186
    %vm290 = vcmp.eq.f32.partialorder %v289, 8.507059e+37
    %v291 = vand.u32 %v186, 2147483648
    %v292 = vor.u32 1.1754944e-38, %v291
    %v293 = vsel %vm290, %v292, %v288
    %v294 = vmul.f32 %v163, %v293
    %v295 = vrcp.pop %v189
    %v296 = vmul.f32 %v189, %v295
    %v297 = vsub.f32 1.0, %v296
    %v298 = vmul.f32 %v295, %v297
    %v299 = vadd.f32 %v295, %v298
    %vm300 = vweird.f32 %v189
    %vm301 = vweird.f32 %v295
    %vm302 = vmor %vm300, %vm301
    %v303 = vsel %vm302, %v295, %v299
    %v304 = vand.u32 2147483647, %v189
    %vm305 = vcmp.eq.f32.partialorder %v304, 8.507059e+37
    %v306 = vand.u32 %v189, 2147483648
    %v307 = vor.u32 1.1754944e-38, %v306
    %v308 = vsel %vm305, %v307, %v303
    %v309 = vmul.f32 %v165, %v308
    %v310 = vld [vmem:[#allocation5] sm:$0xff]
    %v311 = vld [vmem:[#allocation5 + $0x8] sm:$0xff]
    %v312 = vld [vmem:[#allocation5 + $0x10] sm:$0xff]
    %v313 = vld [vmem:[#allocation5 + $0x18] sm:$0xff]
    %v314 = vld [vmem:[#allocation5 + $0x20] sm:$0xff]
    %v315 = vld [vmem:[#allocation5 + $0x28] sm:$0xff]
    %v316 = vld [vmem:[#allocation5 + $0x30] sm:$0xff]
    %v317 = vld [vmem:[#allocation5 + $0x38] sm:$0xff]
    %v318 = vld [vmem:[%s3] sm:$0x1]
    %v320 = vperm.slane %v318, 0
    %v322 = vld [vmem:[#allocation7] sm:$0x1]
    %324 = vset.pattern.permute.xlu0 32
    %325 = vperm.xlu0 %324, %v109
    %v326 = vpop.permute.xlu0 %325
    %329 = vset.pattern.permute.xlu0 32
    %330 = vperm.xlu0 %329, %v110
    %v331 = vpop.permute.xlu0 %330
    %334 = vset.pattern.permute.xlu0 32
    %335 = vperm.xlu0 %334, %v111
    %v336 = vpop.permute.xlu0 %335
    %339 = vset.pattern.permute.xlu0 32
    %340 = vperm.xlu0 %339, %v112
    %v341 = vpop.permute.xlu0 %340
    %344 = vset.pattern.permute.xlu0 32
    %345 = vperm.xlu0 %344, %v113
    %v346 = vpop.permute.xlu0 %345
    %349 = vset.pattern.permute.xlu0 32
    %350 = vperm.xlu0 %349, %v114
    %v351 = vpop.permute.xlu0 %350
    %354 = vset.pattern.permute.xlu0 32
    %355 = vperm.xlu0 %354, %v115
    %v356 = vpop.permute.xlu0 %355
    %359 = vset.pattern.permute.xlu0 32
    %360 = vperm.xlu0 %359, %v116
    %v361 = vpop.permute.xlu0 %360
    %v363 = vperm.slane %v322, 0
    %v364 = vmul.f32 %v326, %v363
    %v365 = vmul.f32 %v331, %v363
    %v366 = vmul.f32 %v336, %v363
    %v367 = vmul.f32 %v341, %v363
    %v368 = vmul.f32 %v346, %v363
    %v369 = vmul.f32 %v351, %v363
    %v370 = vmul.f32 %v356, %v363
    %v371 = vmul.f32 %v361, %v363
    %v372 = vadd.f32 %v320, %v364
    %v373 = vadd.f32 %v320, %v365
    %v374 = vadd.f32 %v320, %v366
    %v375 = vadd.f32 %v320, %v367
    %v376 = vadd.f32 %v320, %v368
    %v377 = vadd.f32 %v320, %v369
    %v378 = vadd.f32 %v320, %v370
    %v379 = vadd.f32 %v320, %v371
    %v380 = vld [vmem:[#allocation7 + $0x1] sm:$0x1]
    %381 = vset.pattern.permute.xlu0 33
    %382 = vperm.xlu0 %381, %v109
    %v383 = vpop.permute.xlu0 %382
    %385 = vset.pattern.permute.xlu0 33
    %386 = vperm.xlu0 %385, %v110
    %v387 = vpop.permute.xlu0 %386
    %389 = vset.pattern.permute.xlu0 33
    %390 = vperm.xlu0 %389, %v111
    %v391 = vpop.permute.xlu0 %390
    %393 = vset.pattern.permute.xlu0 33
    %394 = vperm.xlu0 %393, %v112
    %v395 = vpop.permute.xlu0 %394
    %397 = vset.pattern.permute.xlu0 33
    %398 = vperm.xlu0 %397, %v113
    %v399 = vpop.permute.xlu0 %398
    %401 = vset.pattern.permute.xlu0 33
    %402 = vperm.xlu0 %401, %v114
    %v403 = vpop.permute.xlu0 %402
    %405 = vset.pattern.permute.xlu0 33
    %406 = vperm.xlu0 %405, %v115
    %v407 = vpop.permute.xlu0 %406
    %409 = vset.pattern.permute.xlu0 33
    %410 = vperm.xlu0 %409, %v116
    %v411 = vpop.permute.xlu0 %410
    %v413 = vperm.slane %v380, 0
    %v414 = vmul.f32 %v383, %v413
    %v415 = vmul.f32 %v387, %v413
    %v416 = vmul.f32 %v391, %v413
    %v417 = vmul.f32 %v395, %v413
    %v418 = vmul.f32 %v399, %v413
    %v419 = vmul.f32 %v403, %v413
    %v420 = vmul.f32 %v407, %v413
    %v421 = vmul.f32 %v411, %v413
    %v422 = vadd.f32 %v372, %v414
    %v423 = vadd.f32 %v373, %v415
    %v424 = vadd.f32 %v374, %v416
    %v425 = vadd.f32 %v375, %v417
    %v426 = vadd.f32 %v376, %v418
    %v427 = vadd.f32 %v377, %v419
    %v428 = vadd.f32 %v378, %v420
    %v429 = vadd.f32 %v379, %v421
    %v430 = vld [vmem:[#allocation7 + $0x2] sm:$0x1]
    %431 = vset.pattern.permute.xlu0 34
    %432 = vperm.xlu0 %431, %v109
    %v433 = vpop.permute.xlu0 %432
    %435 = vset.pattern.permute.xlu0 34
    %436 = vperm.xlu0 %435, %v110
    %v437 = vpop.permute.xlu0 %436
    %439 = vset.pattern.permute.xlu0 34
    %440 = vperm.xlu0 %439, %v111
    %v441 = vpop.permute.xlu0 %440
    %443 = vset.pattern.permute.xlu0 34
    %444 = vperm.xlu0 %443, %v112
    %v445 = vpop.permute.xlu0 %444
    %447 = vset.pattern.permute.xlu0 34
    %448 = vperm.xlu0 %447, %v113
    %v449 = vpop.permute.xlu0 %448
    %451 = vset.pattern.permute.xlu0 34
    %452 = vperm.xlu0 %451, %v114
    %v453 = vpop.permute.xlu0 %452
    %455 = vset.pattern.permute.xlu0 34
    %456 = vperm.xlu0 %455, %v115
    %v457 = vpop.permute.xlu0 %456
    %459 = vset.pattern.permute.xlu0 34
    %460 = vperm.xlu0 %459, %v116
    %v461 = vpop.permute.xlu0 %460
    %v463 = vperm.slane %v430, 0
    %v464 = vmul.f32 %v433, %v463
    %v465 = vmul.f32 %v437, %v463
    %v466 = vmul.f32 %v441, %v463
    %v467 = vmul.f32 %v445, %v463
    %v468 = vmul.f32 %v449, %v463
    %v469 = vmul.f32 %v453, %v463
    %v470 = vmul.f32 %v457, %v463
    %v471 = vmul.f32 %v461, %v463
    %v472 = vadd.f32 %v422, %v464
    %v473 = vadd.f32 %v423, %v465
    %v474 = vadd.f32 %v424, %v466
    %v475 = vadd.f32 %v425, %v467
    %v476 = vadd.f32 %v426, %v468
    %v477 = vadd.f32 %v427, %v469
    %v478 = vadd.f32 %v428, %v470
    %v479 = vadd.f32 %v429, %v471
    %v480 = vld [vmem:[#allocation7 + $0x3] sm:$0x1]
    %481 = vset.pattern.permute.xlu0 35
    %482 = vperm.xlu0 %481, %v109
    %v483 = vpop.permute.xlu0 %482
    %485 = vset.pattern.permute.xlu0 35
    %486 = vperm.xlu0 %485, %v110
    %v487 = vpop.permute.xlu0 %486
    %489 = vset.pattern.permute.xlu0 35
    %490 = vperm.xlu0 %489, %v111
    %v491 = vpop.permute.xlu0 %490
    %493 = vset.pattern.permute.xlu0 35
    %494 = vperm.xlu0 %493, %v112
    %v495 = vpop.permute.xlu0 %494
    %497 = vset.pattern.permute.xlu0 35
    %498 = vperm.xlu0 %497, %v113
    %v499 = vpop.permute.xlu0 %498
    %501 = vset.pattern.permute.xlu0 35
    %502 = vperm.xlu0 %501, %v114
    %v503 = vpop.permute.xlu0 %502
    %505 = vset.pattern.permute.xlu0 35
    %506 = vperm.xlu0 %505, %v115
    %v507 = vpop.permute.xlu0 %506
    %509 = vset.pattern.permute.xlu0 35
    %510 = vperm.xlu0 %509, %v116
    %v511 = vpop.permute.xlu0 %510
    %v513 = vperm.slane %v480, 0
    %v514 = vmul.f32 %v483, %v513
    %v515 = vmul.f32 %v487, %v513
    %v516 = vmul.f32 %v491, %v513
    %v517 = vmul.f32 %v495, %v513
    %v518 = vmul.f32 %v499, %v513
    %v519 = vmul.f32 %v503, %v513
    %v520 = vmul.f32 %v507, %v513
    %v521 = vmul.f32 %v511, %v513
    %v522 = vadd.f32 %v472, %v514
    %v523 = vadd.f32 %v473, %v515
    %v524 = vadd.f32 %v474, %v516
    %v525 = vadd.f32 %v475, %v517
    %v526 = vadd.f32 %v476, %v518
    %v527 = vadd.f32 %v477, %v519
    %v528 = vadd.f32 %v478, %v520
    %v529 = vadd.f32 %v479, %v521
    %v530 = vmax.f32 %v522, 0.0
    %v531 = vmax.f32 %v523, 0.0
    %v532 = vmax.f32 %v524, 0.0
    %v533 = vmax.f32 %v525, 0.0
    %v534 = vmax.f32 %v526, 0.0
    %v535 = vmax.f32 %v527, 0.0
    %v536 = vmax.f32 %v528, 0.0
    %v537 = vmax.f32 %v529, 0.0
    %v538 = vld [vmem:[#allocation8] sm:$0xff]
    %v539 = vld [vmem:[#allocation8 + $0x8] sm:$0xff]
    %v540 = vld [vmem:[#allocation8 + $0x10] sm:$0xff]
    %v541 = vld [vmem:[#allocation8 + $0x18] sm:$0xff]
    %v542 = vld [vmem:[#allocation8 + $0x20] sm:$0xff]
    %v543 = vld [vmem:[#allocation8 + $0x28] sm:$0xff]
    %v544 = vld [vmem:[#allocation8 + $0x30] sm:$0xff]
    %v545 = vld [vmem:[#allocation8 + $0x38] sm:$0xff]
    %v546 = vld [vmem:[#allocation8 + $0x40] sm:$0xff]
    %v547 = vld [vmem:[#allocation8 + $0x48] sm:$0xff]
    %v548 = vld [vmem:[#allocation8 + $0x50] sm:$0xff]
    %v549 = vld [vmem:[#allocation8 + $0x58] sm:$0xff]
    %v550 = vld [vmem:[#allocation8 + $0x60] sm:$0xff]
    %v551 = vld [vmem:[#allocation8 + $0x68] sm:$0xff]
    %v552 = vld [vmem:[#allocation8 + $0x70] sm:$0xff]
    %v553 = vld [vmem:[#allocation8 + $0x78] sm:$0xff]
    %v554 = vld [vmem:[#allocation8 + $0x80] sm:$0xff]
    %v555 = vld [vmem:[#allocation8 + $0x88] sm:$0xff]
    %v556 = vld [vmem:[#allocation8 + $0x90] sm:$0xff]
    %v557 = vld [vmem:[#allocation8 + $0x98] sm:$0xff]
    %v558 = vld [vmem:[#allocation8 + $0xa0] sm:$0xff]
    %v559 = vld [vmem:[#allocation8 + $0xa8] sm:$0xff]
    %v560 = vld [vmem:[#allocation8 + $0xb0] sm:$0xff]
    %v561 = vld [vmem:[#allocation8 + $0xb8] sm:$0xff]
    %v562 = vld [vmem:[#allocation8 + $0xc0] sm:$0xff]
    %v563 = vld [vmem:[#allocation8 + $0xc8] sm:$0xff]
    %v564 = vld [vmem:[#allocation8 + $0xd0] sm:$0xff]
    %v565 = vld [vmem:[#allocation8 + $0xd8] sm:$0xff]
    %v566 = vld [vmem:[#allocation8 + $0xe0] sm:$0xff]
    %v567 = vld [vmem:[#allocation8 + $0xe8] sm:$0xff]
    %v568 = vld [vmem:[#allocation8 + $0xf0] sm:$0xff]
    %v569 = vld [vmem:[#allocation8 + $0xf8] sm:$0xff]
    %570 = vmatpush.msra.mxu0 %v568
    %571 = vmatpush.msra.mxu0 %v566
    %572 = vmatpush.msra.mxu0 %v564
    %573 = vmatpush.msra.mxu0 %v562
    %574 = vmatpush.msra.mxu0 %v560
    %575 = vmatpush.msra.mxu0 %v558
    %576 = vmatpush.msra.mxu0 %v556
    %577 = vmatpush.msra.mxu0 %v554
    %578 = vmatpush.msra.mxu0 %v552
    %579 = vmatpush.msra.mxu0 %v550
    %580 = vmatpush.msra.mxu0 %v548
    %581 = vmatpush.msra.mxu0 %v546
    %582 = vmatpush.msra.mxu0 %v544
    %583 = vmatpush.msra.mxu0 %v542
    %584 = vmatpush.msra.mxu0 %v540
    %585 = vmatpush.msra.mxu0 %v538
    %586 = vmatmul.f32.gmra.mxu0 %v530
    %v587 = vpop.f32.mrf.mxu0
    %v588 = vadd.f32 0.0, %v587
    %589 = vmatmul.f32.gmra.mxu0 %v531
    %v590 = vpop.f32.mrf.mxu0
    %v591 = vadd.f32 0.0, %v590
    %592 = vmatmul.f32.gmra.mxu0 %v532
    %v593 = vpop.f32.mrf.mxu0
    %v594 = vadd.f32 0.0, %v593
    %595 = vmatmul.f32.gmra.mxu0 %v533
    %v596 = vpop.f32.mrf.mxu0
    %v597 = vadd.f32 0.0, %v596
    %598 = vmatmul.f32.gmra.mxu0 %v534
    %v599 = vpop.f32.mrf.mxu0
    %v600 = vadd.f32 0.0, %v599
    %601 = vmatmul.f32.gmra.mxu0 %v535
    %v602 = vpop.f32.mrf.mxu0
    %v603 = vadd.f32 0.0, %v602
    %604 = vmatmul.f32.gmra.mxu0 %v536
    %v605 = vpop.f32.mrf.mxu0
    %v606 = vadd.f32 0.0, %v605
    %607 = vmatmul.f32.gmra.mxu0 %v537
    %v608 = vpop.f32.mrf.mxu0
    %v609 = vadd.f32 0.0, %v608
    %610 = vdwg.mxu0
    %611 = vmatpush.msra.mxu0 %v569
    %612 = vmatpush.msra.mxu0 %v567
    %613 = vmatpush.msra.mxu0 %v565
    %614 = vmatpush.msra.mxu0 %v563
    %615 = vmatpush.msra.mxu0 %v561
    %616 = vmatpush.msra.mxu0 %v559
    %617 = vmatpush.msra.mxu0 %v557
    %618 = vmatpush.msra.mxu0 %v555
    %619 = vmatpush.msra.mxu0 %v553
    %620 = vmatpush.msra.mxu0 %v551
    %621 = vmatpush.msra.mxu0 %v549
    %622 = vmatpush.msra.mxu0 %v547
    %623 = vmatpush.msra.mxu0 %v545
    %624 = vmatpush.msra.mxu0 %v543
    %625 = vmatpush.msra.mxu0 %v541
    %626 = vmatpush.msra.mxu0 %v539
    %627 = vmatmul.f32.gmra.mxu0 %v530
    %v628 = vpop.f32.mrf.mxu0
    %v629 = vadd.f32 0.0, %v628
    %630 = vmatmul.f32.gmra.mxu0 %v531
    %v631 = vpop.f32.mrf.mxu0
    %v632 = vadd.f32 0.0, %v631
    %633 = vmatmul.f32.gmra.mxu0 %v532
    %v634 = vpop.f32.mrf.mxu0
    %v635 = vadd.f32 0.0, %v634
    %636 = vmatmul.f32.gmra.mxu0 %v533
    %v637 = vpop.f32.mrf.mxu0
    %v638 = vadd.f32 0.0, %v637
    %639 = vmatmul.f32.gmra.mxu0 %v534
    %v640 = vpop.f32.mrf.mxu0
    %v641 = vadd.f32 0.0, %v640
    %642 = vmatmul.f32.gmra.mxu0 %v535
    %v643 = vpop.f32.mrf.mxu0
    %v644 = vadd.f32 0.0, %v643
    %645 = vmatmul.f32.gmra.mxu0 %v536
    %v646 = vpop.f32.mrf.mxu0
    %v647 = vadd.f32 0.0, %v646
    %648 = vmatmul.f32.gmra.mxu0 %v537
    %v649 = vpop.f32.mrf.mxu0
    %v650 = vadd.f32 0.0, %v649
    %651 = vdwg.mxu0
    %v653 = vsel %vm117, %v204, 0
    %v656 = vsel %vm117, %v219, 0
    %v659 = vsel %vm117, %v234, 0
    %v662 = vsel %vm117, %v249, 0
    %v665 = vsel %vm117, %v264, 0
    %v668 = vsel %vm117, %v279, 0
    %v671 = vsel %vm117, %v294, 0
    %v674 = vsel %vm117, %v309, 0
    %676 = vmatpush.msra.mxu0 0.0
    %677 = vmatpush.msra.mxu0 0.0
    %678 = vmatpush.msra.mxu0 0.0
    %679 = vmatpush.msra.mxu0 0.0
    %680 = vmatpush.msra.mxu0 0.0
    %681 = vmatpush.msra.mxu0 0.0
    %682 = vmatpush.msra.mxu0 0.0
    %683 = vmatpush.msra.mxu0 0.0
    %684 = vmatpush.msra.mxu0 0.0
    %685 = vmatpush.msra.mxu0 0.0
    %686 = vmatpush.msra.mxu0 0.0
    %687 = vmatpush.msra.mxu0 0.0
    %688 = vmatpush.msra.mxu0 %v316
    %689 = vmatpush.msra.mxu0 %v314
    %690 = vmatpush.msra.mxu0 %v312
    %691 = vmatpush.msra.mxu0 %v310
    %692 = vmatmul.f32.gmra.mxu0 %v653
    %v693 = vpop.f32.mrf.mxu0
    %v694 = vadd.f32 %v588, %v693
    %695 = vmatmul.f32.gmra.mxu0 %v656
    %v696 = vpop.f32.mrf.mxu0
    %v697 = vadd.f32 %v591, %v696
    %698 = vmatmul.f32.gmra.mxu0 %v659
    %v699 = vpop.f32.mrf.mxu0
    %v700 = vadd.f32 %v594, %v699
    %701 = vmatmul.f32.gmra.mxu0 %v662
    %v702 = vpop.f32.mrf.mxu0
    %v703 = vadd.f32 %v597, %v702
    %704 = vmatmul.f32.gmra.mxu0 %v665
    %v705 = vpop.f32.mrf.mxu0
    %v706 = vadd.f32 %v600, %v705
    %707 = vmatmul.f32.gmra.mxu0 %v668
    %v708 = vpop.f32.mrf.mxu0
    %v709 = vadd.f32 %v603, %v708
    %710 = vmatmul.f32.gmra.mxu0 %v671
    %v711 = vpop.f32.mrf.mxu0
    %v712 = vadd.f32 %v606, %v711
    %713 = vmatmul.f32.gmra.mxu0 %v674
    %v714 = vpop.f32.mrf.mxu0
    %v715 = vadd.f32 %v609, %v714
    %716 = vdwg.mxu0
    %717 = vmatpush.msra.mxu0 0.0
    %718 = vmatpush.msra.mxu0 0.0
    %719 = vmatpush.msra.mxu0 0.0
    %720 = vmatpush.msra.mxu0 0.0
    %721 = vmatpush.msra.mxu0 0.0
    %722 = vmatpush.msra.mxu0 0.0
    %723 = vmatpush.msra.mxu0 0.0
    %724 = vmatpush.msra.mxu0 0.0
    %725 = vmatpush.msra.mxu0 0.0
    %726 = vmatpush.msra.mxu0 0.0
    %727 = vmatpush.msra.mxu0 0.0
    %728 = vmatpush.msra.mxu0 0.0
    %729 = vmatpush.msra.mxu0 %v317
    %730 = vmatpush.msra.mxu0 %v315
    %731 = vmatpush.msra.mxu0 %v313
    %732 = vmatpush.msra.mxu0 %v311
    %733 = vmatmul.f32.gmra.mxu0 %v653
    %v734 = vpop.f32.mrf.mxu0
    %v735 = vadd.f32 %v629, %v734
    %736 = vmatmul.f32.gmra.mxu0 %v656
    %v737 = vpop.f32.mrf.mxu0
    %v738 = vadd.f32 %v632, %v737
    %739 = vmatmul.f32.gmra.mxu0 %v659
    %v740 = vpop.f32.mrf.mxu0
    %v741 = vadd.f32 %v635, %v740
    %742 = vmatmul.f32.gmra.mxu0 %v662
    %v743 = vpop.f32.mrf.mxu0
    %v744 = vadd.f32 %v638, %v743
    %745 = vmatmul.f32.gmra.mxu0 %v665
    %v746 = vpop.f32.mrf.mxu0
    %v747 = vadd.f32 %v641, %v746
    %748 = vmatmul.f32.gmra.mxu0 %v668
    %v749 = vpop.f32.mrf.mxu0
    %v750 = vadd.f32 %v644, %v749
    %751 = vmatmul.f32.gmra.mxu0 %v671
    %v752 = vpop.f32.mrf.mxu0
    %v753 = vadd.f32 %v647, %v752
    %754 = vmatmul.f32.gmra.mxu0 %v674
    %v755 = vpop.f32.mrf.mxu0
    %v756 = vadd.f32 %v650, %v755
    %757 = vdwg.mxu0
    %v758 = vld [vmem:[%s5] sm:$0x3]
    %v760 = vperm.slane %v758, 0
    %v761 = vperm.slane %v758, 1
    %v764 = vadd.f32 %v694, %v760
    %v765 = vadd.f32 %v735, %v761
    %v766 = vadd.f32 %v697, %v760
    %v767 = vadd.f32 %v738, %v761
    %v768 = vadd.f32 %v700, %v760
    %v769 = vadd.f32 %v741, %v761
    %v770 = vadd.f32 %v703, %v760
    %v771 = vadd.f32 %v744, %v761
    %v772 = vadd.f32 %v706, %v760
    %v773 = vadd.f32 %v747, %v761
    %v774 = vadd.f32 %v709, %v760
    %v775 = vadd.f32 %v750, %v761
    %v776 = vadd.f32 %v712, %v760
    %v777 = vadd.f32 %v753, %v761
    %v778 = vadd.f32 %v715, %v760
    %v779 = vadd.f32 %v756, %v761
    %v780 = vmax.f32 %v764, 0.0
    %v781 = vmax.f32 %v765, 0.0
    %v782 = vmax.f32 %v766, 0.0
    %v783 = vmax.f32 %v767, 0.0
    %v784 = vmax.f32 %v768, 0.0
    %v785 = vmax.f32 %v769, 0.0
    %v786 = vmax.f32 %v770, 0.0
    %v787 = vmax.f32 %v771, 0.0
    %v788 = vmax.f32 %v772, 0.0
    %v789 = vmax.f32 %v773, 0.0
    %v790 = vmax.f32 %v774, 0.0
    %v791 = vmax.f32 %v775, 0.0
    %v792 = vmax.f32 %v776, 0.0
    %v793 = vmax.f32 %v777, 0.0
    %v794 = vmax.f32 %v778, 0.0
    %v795 = vmax.f32 %v779, 0.0
    %796 = vst [vmem:[#allocation12] sm:$0xff] %v780
    %797 = vst [vmem:[#allocation12 + $0x8] sm:$0xff] %v781
    %798 = vst [vmem:[#allocation12 + $0x10] sm:$0xff] %v782
    %799 = vst [vmem:[#allocation12 + $0x18] sm:$0xff] %v783
    %800 = vst [vmem:[#allocation12 + $0x20] sm:$0xff] %v784
    %801 = vst [vmem:[#allocation12 + $0x28] sm:$0xff] %v785
    %802 = vst [vmem:[#allocation12 + $0x30] sm:$0xff] %v786
    %803 = vst [vmem:[#allocation12 + $0x38] sm:$0xff] %v787
    %804 = vst [vmem:[#allocation12 + $0x40] sm:$0xff] %v788
    %805 = vst [vmem:[#allocation12 + $0x48] sm:$0xff] %v789
    %806 = vst [vmem:[#allocation12 + $0x50] sm:$0xff] %v790
    %807 = vst [vmem:[#allocation12 + $0x58] sm:$0xff] %v791
    %808 = vst [vmem:[#allocation12 + $0x60] sm:$0xff] %v792
    %809 = vst [vmem:[#allocation12 + $0x68] sm:$0xff] %v793
    %810 = vst [vmem:[#allocation12 + $0x70] sm:$0xff] %v794
    %811 = vst [vmem:[#allocation12 + $0x78] sm:$0xff] %v795
    %v812 = vld [vmem:[#allocation10] sm:$0xff]
    %v813 = vld [vmem:[#allocation10 + $0x8] sm:$0xff]
    %v814 = vld [vmem:[#allocation10 + $0x10] sm:$0xff]
    %v815 = vld [vmem:[#allocation10 + $0x18] sm:$0xff]
    %v816 = vld [vmem:[#allocation10 + $0x20] sm:$0xff]
    %v817 = vld [vmem:[#allocation10 + $0x28] sm:$0xff]
    %v818 = vld [vmem:[#allocation10 + $0x30] sm:$0xff]
    %v819 = vld [vmem:[#allocation10 + $0x38] sm:$0xff]
    %v820 = vld [vmem:[#allocation10 + $0x40] sm:$0xff]
    %v821 = vld [vmem:[#allocation10 + $0x48] sm:$0xff]
    %v822 = vld [vmem:[#allocation10 + $0x50] sm:$0xff]
    %v823 = vld [vmem:[#allocation10 + $0x58] sm:$0xff]
    %v824 = vld [vmem:[#allocation10 + $0x60] sm:$0xff]
    %v825 = vld [vmem:[#allocation10 + $0x68] sm:$0xff]
    %v826 = vld [vmem:[#allocation10 + $0x70] sm:$0xff]
    %v827 = vld [vmem:[#allocation10 + $0x78] sm:$0xff]
    %v828 = vld [vmem:[#allocation10 + $0x80] sm:$0xff]
    %v829 = vld [vmem:[#allocation10 + $0x88] sm:$0xff]
    %v830 = vld [vmem:[#allocation10 + $0x90] sm:$0xff]
    %v831 = vld [vmem:[#allocation10 + $0x98] sm:$0xff]
    %v832 = vld [vmem:[#allocation10 + $0xa0] sm:$0xff]
    %v833 = vld [vmem:[#allocation10 + $0xa8] sm:$0xff]
    %v834 = vld [vmem:[#allocation10 + $0xb0] sm:$0xff]
    %v835 = vld [vmem:[#allocation10 + $0xb8] sm:$0xff]
    %v836 = vld [vmem:[#allocation10 + $0xc0] sm:$0xff]
    %v837 = vld [vmem:[#allocation10 + $0xc8] sm:$0xff]
    %v838 = vld [vmem:[#allocation10 + $0xd0] sm:$0xff]
    %v839 = vld [vmem:[#allocation10 + $0xd8] sm:$0xff]
    %v840 = vld [vmem:[#allocation10 + $0xe0] sm:$0xff]
    %v841 = vld [vmem:[#allocation10 + $0xe8] sm:$0xff]
    %v842 = vld [vmem:[#allocation10 + $0xf0] sm:$0xff]
    %v843 = vld [vmem:[#allocation10 + $0xf8] sm:$0xff]
    %v844 = vld [vmem:[%s7] sm:$0x1]
    %v846 = vperm.slane %v844, 0
    %848 = vmatpush.msra.mxu0 %v827
    %849 = vmatpush.msra.mxu0 %v826
    %850 = vmatpush.msra.mxu0 %v825
    %851 = vmatpush.msra.mxu0 %v824
    %852 = vmatpush.msra.mxu0 %v823
    %853 = vmatpush.msra.mxu0 %v822
    %854 = vmatpush.msra.mxu0 %v821
    %855 = vmatpush.msra.mxu0 %v820
    %856 = vmatpush.msra.mxu0 %v819
    %857 = vmatpush.msra.mxu0 %v818
    %858 = vmatpush.msra.mxu0 %v817
    %859 = vmatpush.msra.mxu0 %v816
    %860 = vmatpush.msra.mxu0 %v815
    %861 = vmatpush.msra.mxu0 %v814
    %862 = vmatpush.msra.mxu0 %v813
    %863 = vmatpush.msra.mxu0 %v812
    %864 = vmatmul.f32.gmra.mxu0 %v780
    %v865 = vpop.f32.mrf.mxu0
    %v866 = vadd.f32 %v846, %v865
    %867 = vmatmul.f32.gmra.mxu0 %v782
    %v868 = vpop.f32.mrf.mxu0
    %v869 = vadd.f32 %v846, %v868
    %870 = vmatmul.f32.gmra.mxu0 %v784
    %v871 = vpop.f32.mrf.mxu0
    %v872 = vadd.f32 %v846, %v871
    %873 = vmatmul.f32.gmra.mxu0 %v786
    %v874 = vpop.f32.mrf.mxu0
    %v875 = vadd.f32 %v846, %v874
    %876 = vmatmul.f32.gmra.mxu0 %v788
    %v877 = vpop.f32.mrf.mxu0
    %v878 = vadd.f32 %v846, %v877
    %879 = vmatmul.f32.gmra.mxu0 %v790
    %v880 = vpop.f32.mrf.mxu0
    %v881 = vadd.f32 %v846, %v880
    %882 = vmatmul.f32.gmra.mxu0 %v792
    %v883 = vpop.f32.mrf.mxu0
    %v884 = vadd.f32 %v846, %v883
    %885 = vmatmul.f32.gmra.mxu0 %v794
    %v886 = vpop.f32.mrf.mxu0
    %v887 = vadd.f32 %v846, %v886
    %888 = vdwg.mxu0
    %889 = vmatpush.msra.mxu0 %v843
    %890 = vmatpush.msra.mxu0 %v842
    %891 = vmatpush.msra.mxu0 %v841
    %892 = vmatpush.msra.mxu0 %v840
    %893 = vmatpush.msra.mxu0 %v839
    %894 = vmatpush.msra.mxu0 %v838
    %895 = vmatpush.msra.mxu0 %v837
    %896 = vmatpush.msra.mxu0 %v836
    %897 = vmatpush.msra.mxu0 %v835
    %898 = vmatpush.msra.mxu0 %v834
    %899 = vmatpush.msra.mxu0 %v833
    %900 = vmatpush.msra.mxu0 %v832
    %901 = vmatpush.msra.mxu0 %v831
    %902 = vmatpush.msra.mxu0 %v830
    %903 = vmatpush.msra.mxu0 %v829
    %904 = vmatpush.msra.mxu0 %v828
    %905 = vmatmul.f32.gmra.mxu0 %v781
    %v906 = vpop.f32.mrf.mxu0
    %v907 = vadd.f32 %v866, %v906
    %908 = vmatmul.f32.gmra.mxu0 %v783
    %v909 = vpop.f32.mrf.mxu0
    %v910 = vadd.f32 %v869, %v909
    %911 = vmatmul.f32.gmra.mxu0 %v785
    %v912 = vpop.f32.mrf.mxu0
    %v913 = vadd.f32 %v872, %v912
    %914 = vmatmul.f32.gmra.mxu0 %v787
    %v915 = vpop.f32.mrf.mxu0
    %v916 = vadd.f32 %v875, %v915
    %917 = vmatmul.f32.gmra.mxu0 %v789
    %v918 = vpop.f32.mrf.mxu0
    %v919 = vadd.f32 %v878, %v918
    %920 = vmatmul.f32.gmra.mxu0 %v791
    %v921 = vpop.f32.mrf.mxu0
    %v922 = vadd.f32 %v881, %v921
    %923 = vmatmul.f32.gmra.mxu0 %v793
    %v924 = vpop.f32.mrf.mxu0
    %v925 = vadd.f32 %v884, %v924
    %926 = vmatmul.f32.gmra.mxu0 %v795
    %v927 = vpop.f32.mrf.mxu0
    %v928 = vadd.f32 %v887, %v927
    %929 = vdwg.mxu0
    %930 = vst [vmem:[#allocation11] sm:$0xff] %v907
    %931 = vst [vmem:[#allocation11 + $0x8] sm:$0xff] %v910
    %932 = vst [vmem:[#allocation11 + $0x10] sm:$0xff] %v913
    %933 = vst [vmem:[#allocation11 + $0x18] sm:$0xff] %v916
    %934 = vst [vmem:[#allocation11 + $0x20] sm:$0xff] %v919
    %935 = vst [vmem:[#allocation11 + $0x28] sm:$0xff] %v922
    %936 = vst [vmem:[#allocation11 + $0x30] sm:$0xff] %v925
    %937 = vst [vmem:[#allocation11 + $0x38] sm:$0xff] %v928
    // Predicated region
    $region54: #{tpu_custom_call.1} parent=1 // pred_check
      _
    $region55: #{tpu_custom_call.1} parent=1 // pred_check_branch
      %939 = sbr.rel (0) target = $region57
    $region56: #{tpu_custom_call.1} parent=1 // pred_region
      %941 = vsyncadd [#allocation4], 0
      %s942 = sshll.u32 [#allocation11], 4
      %s943 = int_to_ptr.vmem [resolvable:$true] %s942
      %s944 = sshll.u32 %s8, 4
      %s945 = int_to_ptr.hbm [resolvable:$true] %s944
      %950 = dma.vmem_to_hbm [thread:$0]  %s943, 1024, %s945, [#allocation4], 128, 128, 8
    $region57: #{tpu_custom_call.1} parent=1 // pred_fallthru
      _
    // Predicated region
    $region58: #{tpu_custom_call.1} parent=1 // pred_check
      _
    $region59: #{tpu_custom_call.1} parent=1 // pred_check_branch
      %952 = sbr.rel (0) target = $region61
    $region60: #{tpu_custom_call.1} parent=1 // pred_region
      %954 = vsyncadd [#allocation13], 0
      %s955 = sshll.u32 [#allocation12], 4
      %s956 = int_to_ptr.vmem [resolvable:$true] %s955
      %s957 = sshll.u32 %s9, 4
      %s958 = int_to_ptr.hbm [resolvable:$true] %s957
      %963 = dma.vmem_to_hbm [thread:$0]  %s956, 2048, %s958, [#allocation13], 256, 256, 16
    $region61: #{tpu_custom_call.1} parent=1 // pred_fallthru
      _
    // Predicated region
    $region62: #{tpu_custom_call.1} parent=1 // pred_check
      _
    $region63: #{tpu_custom_call.1} parent=1 // pred_check_branch
      %965 = sbr.rel (0) target = $region65
    $region64: #{tpu_custom_call.1} parent=1 // pred_region
      %967 = dma.done [#allocation4], 1024
    $region65: #{tpu_custom_call.1} parent=1 // pred_fallthru
      _
    // Predicated region
    $region66: #{tpu_custom_call.1} parent=1 // pred_check
      _
    $region67: #{tpu_custom_call.1} parent=1 // pred_check_branch
      %969 = sbr.rel (0) target = $region69
    $region68: #{tpu_custom_call.1} parent=1 // pred_region
      %971 = dma.done [#allocation13], 2048
    $region69: #{tpu_custom_call.1} parent=1 // pred_fallthru
      _
    %972 = vsyncpa [#allocation3], 1
    %973 = vsyncpa [#allocation6], 1
    %974 = vsyncpa [#allocation9], 1
    %975 = vsyncpa [#allocation4], 1
    %976 = vsyncpa [#allocation13], 1

</llo_original>
